<compile_context>
chip_gen: v7x
topology: tpu7x:2x2x1
jax: 0.10.0
libtpu: 0.0.40
codegen_flags: <defaults>
</compile_context>

<pallas_src>
import jax
import jax.numpy as jnp
from jax import lax
from jax.experimental import pallas as pl
from jax.experimental.pallas import tpu as pltpu

C_IN = 512
C_OUT = 512


def text_clip_fc_kernel(x_ref, w_ref, b_ref, o_ref):
    # x_ref: (TILE_N, C_IN) block of encoded text features (VMEM).
    # w_ref: (C_OUT, C_IN) PyTorch-layout weight, VMEM-resident across grid.
    # b_ref: (1, C_OUT) bias, VMEM-resident.
    # o_ref: (TILE_N, C_OUT) output block.
    #
    # Contract x's feature dim against the weight's "in" dim directly; this is
    # x @ W^T without any wrapper-side transpose. Accumulate in f32 on the MXU.
    y = lax.dot_general(
        x_ref[...],
        w_ref[...],
        dimension_numbers=(((1,), (1,)), ((), ())),
        preferred_element_type=jnp.float32,
    )
    o_ref[...] = (y + b_ref[...].astype(jnp.float32)).astype(o_ref.dtype)


def text_clip_fc_forward(x, weight, bias, *, tile_n=1024):
    """fc part of TextCLIP.forward.

    x:      (N, 512) encoded text features (f32 or bf16).
    weight: (512, 512) PyTorch-style (out, in) Linear weight.
    bias:   (512,)
    returns (N, 512) in x.dtype.
    """
    n, c = x.shape
    assert c == C_IN, f"expected {C_IN} input features, got {c}"
    assert weight.shape == (C_OUT, C_IN)
    assert bias.shape == (C_OUT,)

    tn = min(tile_n, n)
    grid = (pl.cdiv(n, tn),)
    b2 = bias.reshape(1, C_OUT)

    itemsize = jnp.dtype(x.dtype).itemsize
    cost = pl.CostEstimate(
        flops=2 * n * C_IN * C_OUT,
        transcendentals=0,
        bytes_accessed=(n * C_IN + n * C_OUT) * itemsize
        + (C_OUT * C_IN + C_OUT) * jnp.dtype(weight.dtype).itemsize,
    )

    return pl.pallas_call(
        text_clip_fc_kernel,
        out_shape=jax.ShapeDtypeStruct((n, C_OUT), x.dtype),
        grid_spec=pltpu.PrefetchScalarGridSpec(
            num_scalar_prefetch=0,
            grid=grid,
            in_specs=[
                # Feature stream: tiled over batch, pipelined/double-buffered.
                pl.BlockSpec((tn, C_IN), lambda i: (i, 0)),
                # Weight & bias: same block every step -> VMEM-resident.
                pl.BlockSpec((C_OUT, C_IN), lambda i: (0, 0)),
                pl.BlockSpec((1, C_OUT), lambda i: (0, 0)),
            ],
            out_specs=pl.BlockSpec((tn, C_OUT), lambda i: (i, 0)),
        ),
        compiler_params=pltpu.CompilerParams(
            # "parallel": lets v7x shard the batch grid across its 2 TensorCores.
            dimension_semantics=("parallel",),
        ),
        cost_estimate=cost,
    )(x, weight, b2)


def _reference(x, weight, bias):
    # High-precision reference (avoid TPU default bf16 matmul for f32 refs).
    return (
        jnp.einsum("nc,oc->no", x, weight, precision=lax.Precision.HIGHEST) + bias
    )


if __name__ == "__main__":
    key = jax.random.PRNGKey(0)
    kx, kw, kb, kx2 = jax.random.split(key, 4)

    # Deterministic synthetic Linear(512, 512) parameters (PyTorch-style init).
    bound = 1.0 / (C_IN ** 0.5)
    weight = jax.random.uniform(
        kw, (C_OUT, C_IN), minval=-bound, maxval=bound, dtype=jnp.float32
    )
    bias = jax.random.uniform(
        kb, (C_OUT,), minval=-bound, maxval=bound, dtype=jnp.float32
    )

    # Small shape consistent with the module: batch of 2 encoded text features.
    N = 2
    x = jax.random.normal(kx, (N, C_IN), dtype=jnp.float32)

    out = jax.block_until_ready(text_clip_fc_forward(x, weight, bias))
    ref = _reference(x, weight, bias)
    assert out.shape == (N, C_OUT)
    assert jnp.allclose(out, ref, atol=1e-3, rtol=1e-3), "mismatch vs reference (N=2)"

    # Exercise the tiled / pipelined path (multiple grid steps + partial block).
    N2 = 300
    x2 = jax.random.normal(kx2, (N2, C_IN), dtype=jnp.float32)
    out2 = jax.block_until_ready(text_clip_fc_forward(x2, weight, bias, tile_n=128))
    ref2 = _reference(x2, weight, bias)
    assert out2.shape == (N2, C_OUT)
    assert jnp.allclose(out2, ref2, atol=1e-3, rtol=1e-3), "mismatch vs reference (N=300)"

    print("KERNEL_OK")
</pallas_src>

<mosaic_0001>
module attributes {stable_mosaic.version = 11 : i64} {
  func.func @text_clip_fc_kernel(%arg0: i32, %arg1: memref<2x512xf32, #tpu.memory_space<vmem>>, %arg2: memref<512x512xf32, #tpu.memory_space<vmem>>, %arg3: memref<1x512xf32, #tpu.memory_space<vmem>>, %arg4: memref<2x512xf32, #tpu.memory_space<vmem>>) attributes {dimension_semantics = [#tpu.dimension_semantics<parallel>], iteration_bounds = array<i64: 1>, scalar_prefetch = 0 : i64, scratch_operands = 0 : i64, tpu.core_type = #tpu.core_type<tc>, window_params = [{transform_indices = @transform_0, window_bounds = array<i64: 2, 512>}, {pipeline_mode = #tpu.pipeline_mode<synchronous>, transform_indices = @transform_1, window_bounds = array<i64: 512, 512>}, {pipeline_mode = #tpu.pipeline_mode<synchronous>, transform_indices = @transform_2, window_bounds = array<i64: 1, 512>}, {transform_indices = @transform_3, window_bounds = array<i64: 2, 512>}]} {
    %c0 = arith.constant 0 : index
    %c0_0 = arith.constant 0 : index
    %0 = vector.load %arg1[%c0, %c0_0] : memref<2x512xf32, #tpu.memory_space<vmem>>, vector<2x512xf32>
    %c0_1 = arith.constant 0 : index
    %c0_2 = arith.constant 0 : index
    %1 = vector.load %arg2[%c0_1, %c0_2] : memref<512x512xf32, #tpu.memory_space<vmem>>, vector<512x512xf32>
    %cst = arith.constant dense<0.000000e+00> : vector<2x512xf32>
    %2 = tpu.matmul %0, %1, %cst {dimension_numbers = #tpu.dot_dimension_numbers<[1], [1], [0], [0], [0, 0, 1, 0], [], []>} : vector<2x512xf32>, vector<512x512xf32>, vector<2x512xf32> -> vector<2x512xf32>
    %c0_3 = arith.constant 0 : index
    %c0_4 = arith.constant 0 : index
    %3 = vector.load %arg3[%c0_3, %c0_4] : memref<1x512xf32, #tpu.memory_space<vmem>>, vector<1x512xf32>
    %4 = vector.broadcast %3 : vector<1x512xf32> to vector<2x512xf32>
    %5 = arith.addf %2, %4 : vector<2x512xf32>
    %c0_5 = arith.constant 0 : index
    %c0_6 = arith.constant 0 : index
    %6 = vector.load %arg4[%c0_5, %c0_6] : memref<2x512xf32, #tpu.memory_space<vmem>>, vector<2x512xf32>
    tpu.vector_store %arg4[%c0_5, %c0_6], %5 {strides = array<i32>} : memref<2x512xf32, #tpu.memory_space<vmem>>, vector<2x512xf32>,
    return
  }
  func.func @transform_0(%arg0: i32) -> (i32, i32) {
    %c0_i32 = arith.constant 0 : i32
    %c0_i32_0 = arith.constant 0 : i32
    return %arg0, %c0_i32 : i32, i32
  }
  func.func @transform_1(%arg0: i32) -> (i32, i32) {
    %c0_i32 = arith.constant 0 : i32
    %c0_i32_0 = arith.constant 0 : i32
    %c0_i32_1 = arith.constant 0 : i32
    return %c0_i32, %c0_i32_0 : i32, i32
  }
  func.func @transform_2(%arg0: i32) -> (i32, i32) {
    %c0_i32 = arith.constant 0 : i32
    %c0_i32_0 = arith.constant 0 : i32
    %c0_i32_1 = arith.constant 0 : i32
    return %c0_i32, %c0_i32_0 : i32, i32
  }
  func.func @transform_3(%arg0: i32) -> (i32, i32) {
    %c0_i32 = arith.constant 0 : i32
    %c0_i32_0 = arith.constant 0 : i32
    return %arg0, %c0_i32 : i32, i32
  }
}

</mosaic_0001>

<llo_original>
// kernel: tpu_custom_call.1
$region0: #{tpu_custom_call.1}
  #allocation0 [shape = 'u32[]', space=smem, size = 0x4, offset = 0x4, fixed_abs, tag = 'smem constant byte address 0x4 - core index']
  #allocation1 [shape = 'u32[144,128]{1,0:T(1,128)}', space=vmem, size = 0x12000, scoped, tag = 'internal scratch']
  %s0 = inlined_call_operand.hbm [shape: f32[2,512], index: 0, kind: input, shape index: {}]
  %s1 = inlined_call_operand.hbm [shape: f32[512,512], index: 1, kind: input, shape index: {}]
  %s2 = inlined_call_operand.vmem [shape: f32[1,512], index: 2, kind: input, shape index: {}]
  %s3 = inlined_call_operand.hbm [shape: f32[2,512], index: 3, kind: output, shape index: {}]
  %s4 = sld [smem:[#allocation0]]
  $region30: #{tpu_custom_call.1} parent=0
    _
  %s6 = ssub.s32 1, %s4
  %s7 = scalar_select 0, %s6, %s4
  $region1: #{tpu_custom_call.1} parent=0
    #allocation2 [shape = 'u8[4096]{0}', space=vmem, size = 0x1000, scoped, tag = 'input window, operand 0, single buffered']
    #allocation3 [shape = 's32[1]{0}', space=sflag, size = 0x4, scoped, tag = 'scoped memory for tpu_custom_call.1']
    #allocation4 [shape = 's32[1]{0}', space=sflag, size = 0x4, scoped, tag = 'scoped memory for tpu_custom_call.1']
    #allocation5 [shape = 'u8[1048576]{0}', space=vmem, size = 0x100000, scoped, tag = 'input window, operand 1, single buffered']
    #allocation6 [shape = 's32[1]{0}', space=sflag, size = 0x4, scoped, tag = 'scoped memory for tpu_custom_call.1']
    #allocation7 [shape = 'u8[4096]{0}', space=vmem, size = 0x1000, scoped, tag = 'output window, operand 0, single buffered']
    %8 = vsyncpa [#allocation3], 0
    %9 = vsyncpa [#allocation6], 0
    %10 = vsyncpa [#allocation4], 0
    // Predicated region
    $region2: #{tpu_custom_call.1} parent=1 // pred_check
      _
    $region3: #{tpu_custom_call.1} parent=1 // pred_check_branch
      %12 = sbr.rel (0) target = $region5
    $region4: #{tpu_custom_call.1} parent=1 // pred_region
      %s14 = ssub.s32 128, 128
      %15 = vsyncadd [#allocation3], %s14
      %s17 = sshll.u32 [#allocation2], 4
      %s18 = int_to_ptr.vmem [resolvable:$true] %s17
      %20 = dma.hbm_to_vmem [thread:$0]  %s0, 128, %s18, [#allocation3]
    $region5: #{tpu_custom_call.1} parent=1 // pred_fallthru
      _
    // Predicated region
    $region6: #{tpu_custom_call.1} parent=1 // pred_check
      _
    $region7: #{tpu_custom_call.1} parent=1 // pred_check_branch
      %22 = sbr.rel (0) target = $region9
    $region8: #{tpu_custom_call.1} parent=1 // pred_region
      %s24 = ssub.s32 32768, 32768
      %25 = vsyncadd [#allocation6], %s24
      %s26 = sshll.u32 [#allocation5], 4
      %s27 = int_to_ptr.vmem [resolvable:$true] %s26
      %32 = dma.hbm_to_vmem [thread:$0]  %s1, 32768, %s27, [#allocation6], 512, 512, 32
    $region9: #{tpu_custom_call.1} parent=1 // pred_fallthru
      _
    // Predicated region
    $region10: #{tpu_custom_call.1} parent=1 // pred_check
      _
    $region11: #{tpu_custom_call.1} parent=1 // pred_check_branch
      %34 = sbr.rel (0) target = $region13
    $region12: #{tpu_custom_call.1} parent=1 // pred_region
      _
    $region13: #{tpu_custom_call.1} parent=1 // pred_fallthru
      _
    // Predicated region
    $region14: #{tpu_custom_call.1} parent=1 // pred_check
      _
    $region15: #{tpu_custom_call.1} parent=1 // pred_check_branch
      %36 = sbr.rel (0) target = $region17
    $region16: #{tpu_custom_call.1} parent=1 // pred_region
      %37 = dma.done [#allocation3], 128
    $region17: #{tpu_custom_call.1} parent=1 // pred_fallthru
      _
    // Predicated region
    $region18: #{tpu_custom_call.1} parent=1 // pred_check
      _
    $region19: #{tpu_custom_call.1} parent=1 // pred_check_branch
      %39 = sbr.rel (0) target = $region21
    $region20: #{tpu_custom_call.1} parent=1 // pred_region
      %40 = dma.done [#allocation6], 32768
    $region21: #{tpu_custom_call.1} parent=1 // pred_fallthru
      _
    %v41 = vld [vmem:[#allocation2] sm:$0xff]
    %v42 = vld [vmem:[#allocation5] sm:$0xff]
    %v43 = vld [vmem:[#allocation5 + $0x8] sm:$0xff]
    %v44 = vld [vmem:[#allocation5 + $0x10] sm:$0xff]
    %v45 = vld [vmem:[#allocation5 + $0x18] sm:$0xff]
    %v46 = vld [vmem:[#allocation5 + $0x20] sm:$0xff]
    %v47 = vld [vmem:[#allocation5 + $0x28] sm:$0xff]
    %v48 = vld [vmem:[#allocation5 + $0x30] sm:$0xff]
    %v49 = vld [vmem:[#allocation5 + $0x38] sm:$0xff]
    %v50 = vld [vmem:[#allocation5 + $0x40] sm:$0xff]
    %v51 = vld [vmem:[#allocation5 + $0x48] sm:$0xff]
    %v52 = vld [vmem:[#allocation5 + $0x50] sm:$0xff]
    %v53 = vld [vmem:[#allocation5 + $0x58] sm:$0xff]
    %v54 = vld [vmem:[#allocation5 + $0x60] sm:$0xff]
    %v55 = vld [vmem:[#allocation5 + $0x68] sm:$0xff]
    %v56 = vld [vmem:[#allocation5 + $0x70] sm:$0xff]
    %v57 = vld [vmem:[#allocation5 + $0x78] sm:$0xff]
    %v58 = vld [vmem:[#allocation5 + $0x80] sm:$0xff]
    %v59 = vld [vmem:[#allocation5 + $0x88] sm:$0xff]
    %v60 = vld [vmem:[#allocation5 + $0x90] sm:$0xff]
    %v61 = vld [vmem:[#allocation5 + $0x98] sm:$0xff]
    %v62 = vld [vmem:[#allocation5 + $0xa0] sm:$0xff]
    %v63 = vld [vmem:[#allocation5 + $0xa8] sm:$0xff]
    %v64 = vld [vmem:[#allocation5 + $0xb0] sm:$0xff]
    %v65 = vld [vmem:[#allocation5 + $0xb8] sm:$0xff]
    %v66 = vld [vmem:[#allocation5 + $0xc0] sm:$0xff]
    %v67 = vld [vmem:[#allocation5 + $0xc8] sm:$0xff]
    %v68 = vld [vmem:[#allocation5 + $0xd0] sm:$0xff]
    %v69 = vld [vmem:[#allocation5 + $0xd8] sm:$0xff]
    %v70 = vld [vmem:[#allocation5 + $0xe0] sm:$0xff]
    %v71 = vld [vmem:[#allocation5 + $0xe8] sm:$0xff]
    %v72 = vld [vmem:[#allocation5 + $0xf0] sm:$0xff]
    %v73 = vld [vmem:[#allocation5 + $0xf8] sm:$0xff]
    %v74 = vld [vmem:[#allocation5 + $0x100] sm:$0xff]
    %v75 = vld [vmem:[#allocation5 + $0x108] sm:$0xff]
    %v76 = vld [vmem:[#allocation5 + $0x110] sm:$0xff]
    %v77 = vld [vmem:[#allocation5 + $0x118] sm:$0xff]
    %v78 = vld [vmem:[#allocation5 + $0x120] sm:$0xff]
    %v79 = vld [vmem:[#allocation5 + $0x128] sm:$0xff]
    %v80 = vld [vmem:[#allocation5 + $0x130] sm:$0xff]
    %v81 = vld [vmem:[#allocation5 + $0x138] sm:$0xff]
    %v82 = vld [vmem:[#allocation5 + $0x140] sm:$0xff]
    %v83 = vld [vmem:[#allocation5 + $0x148] sm:$0xff]
    %v84 = vld [vmem:[#allocation5 + $0x150] sm:$0xff]
    %v85 = vld [vmem:[#allocation5 + $0x158] sm:$0xff]
    %v86 = vld [vmem:[#allocation5 + $0x160] sm:$0xff]
    %v87 = vld [vmem:[#allocation5 + $0x168] sm:$0xff]
    %v88 = vld [vmem:[#allocation5 + $0x170] sm:$0xff]
    %v89 = vld [vmem:[#allocation5 + $0x178] sm:$0xff]
    %v90 = vld [vmem:[#allocation5 + $0x180] sm:$0xff]
    %v91 = vld [vmem:[#allocation5 + $0x188] sm:$0xff]
    %v92 = vld [vmem:[#allocation5 + $0x190] sm:$0xff]
    %v93 = vld [vmem:[#allocation5 + $0x198] sm:$0xff]
    %v94 = vld [vmem:[#allocation5 + $0x1a0] sm:$0xff]
    %v95 = vld [vmem:[#allocation5 + $0x1a8] sm:$0xff]
    %v96 = vld [vmem:[#allocation5 + $0x1b0] sm:$0xff]
    %v97 = vld [vmem:[#allocation5 + $0x1b8] sm:$0xff]
    %v98 = vld [vmem:[#allocation5 + $0x1c0] sm:$0xff]
    %v99 = vld [vmem:[#allocation5 + $0x1c8] sm:$0xff]
    %v100 = vld [vmem:[#allocation5 + $0x1d0] sm:$0xff]
    %v101 = vld [vmem:[#allocation5 + $0x1d8] sm:$0xff]
    %v102 = vld [vmem:[#allocation5 + $0x1e0] sm:$0xff]
    %v103 = vld [vmem:[#allocation5 + $0x1e8] sm:$0xff]
    %v104 = vld [vmem:[#allocation5 + $0x1f0] sm:$0xff]
    %v105 = vld [vmem:[#allocation5 + $0x1f8] sm:$0xff]
    %v106 = vld [vmem:[#allocation5 + $0x200] sm:$0xff]
    %v107 = vld [vmem:[#allocation5 + $0x208] sm:$0xff]
    %v108 = vld [vmem:[#allocation5 + $0x210] sm:$0xff]
    %v109 = vld [vmem:[#allocation5 + $0x218] sm:$0xff]
    %v110 = vld [vmem:[#allocation5 + $0x220] sm:$0xff]
    %v111 = vld [vmem:[#allocation5 + $0x228] sm:$0xff]
    %v112 = vld [vmem:[#allocation5 + $0x230] sm:$0xff]
    %v113 = vld [vmem:[#allocation5 + $0x238] sm:$0xff]
    %v114 = vld [vmem:[#allocation5 + $0x240] sm:$0xff]
    %v115 = vld [vmem:[#allocation5 + $0x248] sm:$0xff]
    %v116 = vld [vmem:[#allocation5 + $0x250] sm:$0xff]
    %v117 = vld [vmem:[#allocation5 + $0x258] sm:$0xff]
    %v118 = vld [vmem:[#allocation5 + $0x260] sm:$0xff]
    %v119 = vld [vmem:[#allocation5 + $0x268] sm:$0xff]
    %v120 = vld [vmem:[#allocation5 + $0x270] sm:$0xff]
    %v121 = vld [vmem:[#allocation5 + $0x278] sm:$0xff]
    %v122 = vld [vmem:[#allocation5 + $0x280] sm:$0xff]
    %v123 = vld [vmem:[#allocation5 + $0x288] sm:$0xff]
    %v124 = vld [vmem:[#allocation5 + $0x290] sm:$0xff]
    %v125 = vld [vmem:[#allocation5 + $0x298] sm:$0xff]
    %v126 = vld [vmem:[#allocation5 + $0x2a0] sm:$0xff]
    %v127 = vld [vmem:[#allocation5 + $0x2a8] sm:$0xff]
    %v128 = vld [vmem:[#allocation5 + $0x2b0] sm:$0xff]
    %v129 = vld [vmem:[#allocation5 + $0x2b8] sm:$0xff]
    %v130 = vld [vmem:[#allocation5 + $0x2c0] sm:$0xff]
    %v131 = vld [vmem:[#allocation5 + $0x2c8] sm:$0xff]
    %v132 = vld [vmem:[#allocation5 + $0x2d0] sm:$0xff]
    %v133 = vld [vmem:[#allocation5 + $0x2d8] sm:$0xff]
    %v134 = vld [vmem:[#allocation5 + $0x2e0] sm:$0xff]
    %v135 = vld [vmem:[#allocation5 + $0x2e8] sm:$0xff]
    %v136 = vld [vmem:[#allocation5 + $0x2f0] sm:$0xff]
    %v137 = vld [vmem:[#allocation5 + $0x2f8] sm:$0xff]
    %v138 = vld [vmem:[#allocation5 + $0x300] sm:$0xff]
    %v139 = vld [vmem:[#allocation5 + $0x308] sm:$0xff]
    %v140 = vld [vmem:[#allocation5 + $0x310] sm:$0xff]
    %v141 = vld [vmem:[#allocation5 + $0x318] sm:$0xff]
    %v142 = vld [vmem:[#allocation5 + $0x320] sm:$0xff]
    %v143 = vld [vmem:[#allocation5 + $0x328] sm:$0xff]
    %v144 = vld [vmem:[#allocation5 + $0x330] sm:$0xff]
    %v145 = vld [vmem:[#allocation5 + $0x338] sm:$0xff]
    %v146 = vld [vmem:[#allocation5 + $0x340] sm:$0xff]
    %v147 = vld [vmem:[#allocation5 + $0x348] sm:$0xff]
    %v148 = vld [vmem:[#allocation5 + $0x350] sm:$0xff]
    %v149 = vld [vmem:[#allocation5 + $0x358] sm:$0xff]
    %v150 = vld [vmem:[#allocation5 + $0x360] sm:$0xff]
    %v151 = vld [vmem:[#allocation5 + $0x368] sm:$0xff]
    %v152 = vld [vmem:[#allocation5 + $0x370] sm:$0xff]
    %v153 = vld [vmem:[#allocation5 + $0x378] sm:$0xff]
    %v154 = vld [vmem:[#allocation5 + $0x380] sm:$0xff]
    %v155 = vld [vmem:[#allocation5 + $0x388] sm:$0xff]
    %v156 = vld [vmem:[#allocation5 + $0x390] sm:$0xff]
    %v157 = vld [vmem:[#allocation5 + $0x398] sm:$0xff]
    %v158 = vld [vmem:[#allocation5 + $0x3a0] sm:$0xff]
    %v159 = vld [vmem:[#allocation5 + $0x3a8] sm:$0xff]
    %v160 = vld [vmem:[#allocation5 + $0x3b0] sm:$0xff]
    %v161 = vld [vmem:[#allocation5 + $0x3b8] sm:$0xff]
    %v162 = vld [vmem:[#allocation5 + $0x3c0] sm:$0xff]
    %v163 = vld [vmem:[#allocation5 + $0x3c8] sm:$0xff]
    %v164 = vld [vmem:[#allocation5 + $0x3d0] sm:$0xff]
    %v165 = vld [vmem:[#allocation5 + $0x3d8] sm:$0xff]
    %v166 = vld [vmem:[#allocation5 + $0x3e0] sm:$0xff]
    %v167 = vld [vmem:[#allocation5 + $0x3e8] sm:$0xff]
    %v168 = vld [vmem:[#allocation5 + $0x3f0] sm:$0xff]
    %v169 = vld [vmem:[#allocation5 + $0x3f8] sm:$0xff]
    %v170 = vld [vmem:[#allocation5 + $0x400] sm:$0xff]
    %v171 = vld [vmem:[#allocation5 + $0x408] sm:$0xff]
    %v172 = vld [vmem:[#allocation5 + $0x410] sm:$0xff]
    %v173 = vld [vmem:[#allocation5 + $0x418] sm:$0xff]
    %v174 = vld [vmem:[#allocation5 + $0x420] sm:$0xff]
    %v175 = vld [vmem:[#allocation5 + $0x428] sm:$0xff]
    %v176 = vld [vmem:[#allocation5 + $0x430] sm:$0xff]
    %v177 = vld [vmem:[#allocation5 + $0x438] sm:$0xff]
    %v178 = vld [vmem:[#allocation5 + $0x440] sm:$0xff]
    %v179 = vld [vmem:[#allocation5 + $0x448] sm:$0xff]
    %v180 = vld [vmem:[#allocation5 + $0x450] sm:$0xff]
    %v181 = vld [vmem:[#allocation5 + $0x458] sm:$0xff]
    %v182 = vld [vmem:[#allocation5 + $0x460] sm:$0xff]
    %v183 = vld [vmem:[#allocation5 + $0x468] sm:$0xff]
    %v184 = vld [vmem:[#allocation5 + $0x470] sm:$0xff]
    %v185 = vld [vmem:[#allocation5 + $0x478] sm:$0xff]
    %v186 = vld [vmem:[#allocation5 + $0x480] sm:$0xff]
    %v187 = vld [vmem:[#allocation5 + $0x488] sm:$0xff]
    %v188 = vld [vmem:[#allocation5 + $0x490] sm:$0xff]
    %v189 = vld [vmem:[#allocation5 + $0x498] sm:$0xff]
    %v190 = vld [vmem:[#allocation5 + $0x4a0] sm:$0xff]
    %v191 = vld [vmem:[#allocation5 + $0x4a8] sm:$0xff]
    %v192 = vld [vmem:[#allocation5 + $0x4b0] sm:$0xff]
    %v193 = vld [vmem:[#allocation5 + $0x4b8] sm:$0xff]
    %v194 = vld [vmem:[#allocation5 + $0x4c0] sm:$0xff]
    %v195 = vld [vmem:[#allocation5 + $0x4c8] sm:$0xff]
    %v196 = vld [vmem:[#allocation5 + $0x4d0] sm:$0xff]
    %v197 = vld [vmem:[#allocation5 + $0x4d8] sm:$0xff]
    %v198 = vld [vmem:[#allocation5 + $0x4e0] sm:$0xff]
    %v199 = vld [vmem:[#allocation5 + $0x4e8] sm:$0xff]
    %v200 = vld [vmem:[#allocation5 + $0x4f0] sm:$0xff]
    %v201 = vld [vmem:[#allocation5 + $0x4f8] sm:$0xff]
    %v202 = vld [vmem:[#allocation5 + $0x500] sm:$0xff]
    %v203 = vld [vmem:[#allocation5 + $0x508] sm:$0xff]
    %v204 = vld [vmem:[#allocation5 + $0x510] sm:$0xff]
    %v205 = vld [vmem:[#allocation5 + $0x518] sm:$0xff]
    %v206 = vld [vmem:[#allocation5 + $0x520] sm:$0xff]
    %v207 = vld [vmem:[#allocation5 + $0x528] sm:$0xff]
    %v208 = vld [vmem:[#allocation5 + $0x530] sm:$0xff]
    %v209 = vld [vmem:[#allocation5 + $0x538] sm:$0xff]
    %v210 = vld [vmem:[#allocation5 + $0x540] sm:$0xff]
    %v211 = vld [vmem:[#allocation5 + $0x548] sm:$0xff]
    %v212 = vld [vmem:[#allocation5 + $0x550] sm:$0xff]
    %v213 = vld [vmem:[#allocation5 + $0x558] sm:$0xff]
    %v214 = vld [vmem:[#allocation5 + $0x560] sm:$0xff]
    %v215 = vld [vmem:[#allocation5 + $0x568] sm:$0xff]
    %v216 = vld [vmem:[#allocation5 + $0x570] sm:$0xff]
    %v217 = vld [vmem:[#allocation5 + $0x578] sm:$0xff]
    %v218 = vld [vmem:[#allocation5 + $0x580] sm:$0xff]
    %v219 = vld [vmem:[#allocation5 + $0x588] sm:$0xff]
    %v220 = vld [vmem:[#allocation5 + $0x590] sm:$0xff]
    %v221 = vld [vmem:[#allocation5 + $0x598] sm:$0xff]
    %v222 = vld [vmem:[#allocation5 + $0x5a0] sm:$0xff]
    %v223 = vld [vmem:[#allocation5 + $0x5a8] sm:$0xff]
    %v224 = vld [vmem:[#allocation5 + $0x5b0] sm:$0xff]
    %v225 = vld [vmem:[#allocation5 + $0x5b8] sm:$0xff]
    %v226 = vld [vmem:[#allocation5 + $0x5c0] sm:$0xff]
    %v227 = vld [vmem:[#allocation5 + $0x5c8] sm:$0xff]
    %v228 = vld [vmem:[#allocation5 + $0x5d0] sm:$0xff]
    %v229 = vld [vmem:[#allocation5 + $0x5d8] sm:$0xff]
    %v230 = vld [vmem:[#allocation5 + $0x5e0] sm:$0xff]
    %v231 = vld [vmem:[#allocation5 + $0x5e8] sm:$0xff]
    %v232 = vld [vmem:[#allocation5 + $0x5f0] sm:$0xff]
    %v233 = vld [vmem:[#allocation5 + $0x5f8] sm:$0xff]
    %v234 = vld [vmem:[#allocation5 + $0x600] sm:$0xff]
    %v235 = vld [vmem:[#allocation5 + $0x608] sm:$0xff]
    %v236 = vld [vmem:[#allocation5 + $0x610] sm:$0xff]
    %v237 = vld [vmem:[#allocation5 + $0x618] sm:$0xff]
    %v238 = vld [vmem:[#allocation5 + $0x620] sm:$0xff]
    %v239 = vld [vmem:[#allocation5 + $0x628] sm:$0xff]
    %v240 = vld [vmem:[#allocation5 + $0x630] sm:$0xff]
    %v241 = vld [vmem:[#allocation5 + $0x638] sm:$0xff]
    %v242 = vld [vmem:[#allocation5 + $0x640] sm:$0xff]
    %v243 = vld [vmem:[#allocation5 + $0x648] sm:$0xff]
    %v244 = vld [vmem:[#allocation5 + $0x650] sm:$0xff]
    %v245 = vld [vmem:[#allocation5 + $0x658] sm:$0xff]
    %v246 = vld [vmem:[#allocation5 + $0x660] sm:$0xff]
    %v247 = vld [vmem:[#allocation5 + $0x668] sm:$0xff]
    %v248 = vld [vmem:[#allocation5 + $0x670] sm:$0xff]
    %v249 = vld [vmem:[#allocation5 + $0x678] sm:$0xff]
    %v250 = vld [vmem:[#allocation5 + $0x680] sm:$0xff]
    %v251 = vld [vmem:[#allocation5 + $0x688] sm:$0xff]
    %v252 = vld [vmem:[#allocation5 + $0x690] sm:$0xff]
    %v253 = vld [vmem:[#allocation5 + $0x698] sm:$0xff]
    %v254 = vld [vmem:[#allocation5 + $0x6a0] sm:$0xff]
    %v255 = vld [vmem:[#allocation5 + $0x6a8] sm:$0xff]
    %v256 = vld [vmem:[#allocation5 + $0x6b0] sm:$0xff]
    %v257 = vld [vmem:[#allocation5 + $0x6b8] sm:$0xff]
    %v258 = vld [vmem:[#allocation5 + $0x6c0] sm:$0xff]
    %v259 = vld [vmem:[#allocation5 + $0x6c8] sm:$0xff]
    %v260 = vld [vmem:[#allocation5 + $0x6d0] sm:$0xff]
    %v261 = vld [vmem:[#allocation5 + $0x6d8] sm:$0xff]
    %v262 = vld [vmem:[#allocation5 + $0x6e0] sm:$0xff]
    %v263 = vld [vmem:[#allocation5 + $0x6e8] sm:$0xff]
    %v264 = vld [vmem:[#allocation5 + $0x6f0] sm:$0xff]
    %v265 = vld [vmem:[#allocation5 + $0x6f8] sm:$0xff]
    %v266 = vld [vmem:[#allocation5 + $0x700] sm:$0xff]
    %v267 = vld [vmem:[#allocation5 + $0x708] sm:$0xff]
    %v268 = vld [vmem:[#allocation5 + $0x710] sm:$0xff]
    %v269 = vld [vmem:[#allocation5 + $0x718] sm:$0xff]
    %v270 = vld [vmem:[#allocation5 + $0x720] sm:$0xff]
    %v271 = vld [vmem:[#allocation5 + $0x728] sm:$0xff]
    %v272 = vld [vmem:[#allocation5 + $0x730] sm:$0xff]
    %v273 = vld [vmem:[#allocation5 + $0x738] sm:$0xff]
    %v274 = vld [vmem:[#allocation5 + $0x740] sm:$0xff]
    %v275 = vld [vmem:[#allocation5 + $0x748] sm:$0xff]
    %v276 = vld [vmem:[#allocation5 + $0x750] sm:$0xff]
    %v277 = vld [vmem:[#allocation5 + $0x758] sm:$0xff]
    %v278 = vld [vmem:[#allocation5 + $0x760] sm:$0xff]
    %v279 = vld [vmem:[#allocation5 + $0x768] sm:$0xff]
    %v280 = vld [vmem:[#allocation5 + $0x770] sm:$0xff]
    %v281 = vld [vmem:[#allocation5 + $0x778] sm:$0xff]
    %v282 = vld [vmem:[#allocation5 + $0x780] sm:$0xff]
    %v283 = vld [vmem:[#allocation5 + $0x788] sm:$0xff]
    %v284 = vld [vmem:[#allocation5 + $0x790] sm:$0xff]
    %v285 = vld [vmem:[#allocation5 + $0x798] sm:$0xff]
    %v286 = vld [vmem:[#allocation5 + $0x7a0] sm:$0xff]
    %v287 = vld [vmem:[#allocation5 + $0x7a8] sm:$0xff]
    %v288 = vld [vmem:[#allocation5 + $0x7b0] sm:$0xff]
    %v289 = vld [vmem:[#allocation5 + $0x7b8] sm:$0xff]
    %v290 = vld [vmem:[#allocation5 + $0x7c0] sm:$0xff]
    %v291 = vld [vmem:[#allocation5 + $0x7c8] sm:$0xff]
    %v292 = vld [vmem:[#allocation5 + $0x7d0] sm:$0xff]
    %v293 = vld [vmem:[#allocation5 + $0x7d8] sm:$0xff]
    %v294 = vld [vmem:[#allocation5 + $0x7e0] sm:$0xff]
    %v295 = vld [vmem:[#allocation5 + $0x7e8] sm:$0xff]
    %v296 = vld [vmem:[#allocation5 + $0x7f0] sm:$0xff]
    %v297 = vld [vmem:[#allocation5 + $0x7f8] sm:$0xff]
    %v298 = vld [vmem:[%s2] sm:$0xf]
    %v300 = vlaneseq
    %v301 = vshrl.u32 %v300, 7
    %v302 = vsub.s32 0, %v301
    %v303 = vrot.slane %v298, %v302
    %v304 = vlaneseq
    %v305 = vshrl.u32 %v304, 7
    %v306 = vsub.s32 1, %v305
    %v307 = vrot.slane %v298, %v306
    %v308 = vlaneseq
    %v309 = vshrl.u32 %v308, 7
    %v310 = vsub.s32 2, %v309
    %v311 = vrot.slane %v298, %v310
    %v312 = vlaneseq
    %v313 = vshrl.u32 %v312, 7
    %v314 = vsub.s32 3, %v313
    %v315 = vrot.slane %v298, %v314
    %v321 = vcombine.high %v41, %v41
    %v323 = vunpack.c.l.s4 1983009808
    %v324 = vunpack.c.0.s8 %v323
    %v325 = vlaneseq
    %v326 = vshrl.u32 %v325, 7
    %v327 = vsub.s32 %v324, %v326
    %v328 = vrot.slane %v41, %v327
    %v330 = vunpack.c.l.s4 1983009808
    %v331 = vunpack.c.0.s8 %v330
    %v332 = vlaneseq
    %v333 = vshrl.u32 %v332, 7
    %v334 = vsub.s32 %v331, %v333
    %v335 = vrot.slane %v321, %v334
    %v336 = vcombine.high %v328, %v328
    %v337 = vcombine.high %v335, %v335
    %342 = vmatprep.subr.mxu0 %v43
    %343 = vmatpush1.xpose.msra.mxu0 %v42
    %344 = vmatprep.subr.mxu0 %v47
    %345 = vmatpush1.xpose.msra.mxu0 %v46
    %346 = vmatprep.subr.mxu0 %v51
    %347 = vmatpush1.xpose.msra.mxu0 %v50
    %348 = vmatprep.subr.mxu0 %v55
    %349 = vmatpush1.xpose.msra.mxu0 %v54
    %350 = vmatprep.subr.mxu0 %v59
    %351 = vmatpush1.xpose.msra.mxu0 %v58
    %352 = vmatprep.subr.mxu0 %v63
    %353 = vmatpush1.xpose.msra.mxu0 %v62
    %354 = vmatprep.subr.mxu0 %v67
    %355 = vmatpush1.xpose.msra.mxu0 %v66
    %356 = vmatprep.subr.mxu0 %v71
    %357 = vmatpush1.xpose.msra.mxu0 %v70
    %358 = vmatprep.subr.mxu0 %v75
    %359 = vmatpush1.xpose.msra.mxu0 %v74
    %360 = vmatprep.subr.mxu0 %v79
    %361 = vmatpush1.xpose.msra.mxu0 %v78
    %362 = vmatprep.subr.mxu0 %v83
    %363 = vmatpush1.xpose.msra.mxu0 %v82
    %364 = vmatprep.subr.mxu0 %v87
    %365 = vmatpush1.xpose.msra.mxu0 %v86
    %366 = vmatprep.subr.mxu0 %v91
    %367 = vmatpush1.xpose.msra.mxu0 %v90
    %368 = vmatprep.subr.mxu0 %v95
    %369 = vmatpush1.xpose.msra.mxu0 %v94
    %370 = vmatprep.subr.mxu0 %v99
    %371 = vmatpush1.xpose.msra.mxu0 %v98
    %372 = vmatprep.subr.mxu0 %v103
    %373 = vmatpush1.xpose.msra.mxu0 %v102
    %374 = vmatprep.subr.mxu0 %v107
    %375 = vmatpush1.xpose.msra.mxu0 %v106
    %376 = vmatprep.subr.mxu0 %v111
    %377 = vmatpush1.xpose.msra.mxu0 %v110
    %378 = vmatprep.subr.mxu0 %v115
    %379 = vmatpush1.xpose.msra.mxu0 %v114
    %380 = vmatprep.subr.mxu0 %v119
    %381 = vmatpush1.xpose.msra.mxu0 %v118
    %382 = vmatprep.subr.mxu0 %v123
    %383 = vmatpush1.xpose.msra.mxu0 %v122
    %384 = vmatprep.subr.mxu0 %v127
    %385 = vmatpush1.xpose.msra.mxu0 %v126
    %386 = vmatprep.subr.mxu0 %v131
    %387 = vmatpush1.xpose.msra.mxu0 %v130
    %388 = vmatprep.subr.mxu0 %v135
    %389 = vmatpush1.xpose.msra.mxu0 %v134
    %390 = vmatprep.subr.mxu0 %v139
    %391 = vmatpush1.xpose.msra.mxu0 %v138
    %392 = vmatprep.subr.mxu0 %v143
    %393 = vmatpush1.xpose.msra.mxu0 %v142
    %394 = vmatprep.subr.mxu0 %v147
    %395 = vmatpush1.xpose.msra.mxu0 %v146
    %396 = vmatprep.subr.mxu0 %v151
    %397 = vmatpush1.xpose.msra.mxu0 %v150
    %398 = vmatprep.subr.mxu0 %v155
    %399 = vmatpush1.xpose.msra.mxu0 %v154
    %400 = vmatprep.subr.mxu0 %v159
    %401 = vmatpush1.xpose.msra.mxu0 %v158
    %402 = vmatprep.subr.mxu0 %v163
    %403 = vmatpush1.xpose.msra.mxu0 %v162
    %404 = vmatprep.subr.mxu0 %v167
    %405 = vmatpush1.xpose.msra.mxu0 %v166
    %406 = vmatprep.mubr.f32.mxu0 %v336
    %407 = vmatmul.mubr.f32.gmra.mrb[0].mxu0 %v328
    %v408 = vpop.f32.mrb[0].mxu0
    %v409 = vadd.f32 %v303, %v408
    %v410 = vpop.f32.mrb[0].mxu0
    %v411 = vadd.f32 %v307, %v410
    %412 = vdwg.mxu0
    %413 = vmatprep.subr.mxu0 %v45
    %414 = vmatpush1.xpose.msra.mxu0 %v44
    %415 = vmatprep.subr.mxu0 %v49
    %416 = vmatpush1.xpose.msra.mxu0 %v48
    %417 = vmatprep.subr.mxu0 %v53
    %418 = vmatpush1.xpose.msra.mxu0 %v52
    %419 = vmatprep.subr.mxu0 %v57
    %420 = vmatpush1.xpose.msra.mxu0 %v56
    %421 = vmatprep.subr.mxu0 %v61
    %422 = vmatpush1.xpose.msra.mxu0 %v60
    %423 = vmatprep.subr.mxu0 %v65
    %424 = vmatpush1.xpose.msra.mxu0 %v64
    %425 = vmatprep.subr.mxu0 %v69
    %426 = vmatpush1.xpose.msra.mxu0 %v68
    %427 = vmatprep.subr.mxu0 %v73
    %428 = vmatpush1.xpose.msra.mxu0 %v72
    %429 = vmatprep.subr.mxu0 %v77
    %430 = vmatpush1.xpose.msra.mxu0 %v76
    %431 = vmatprep.subr.mxu0 %v81
    %432 = vmatpush1.xpose.msra.mxu0 %v80
    %433 = vmatprep.subr.mxu0 %v85
    %434 = vmatpush1.xpose.msra.mxu0 %v84
    %435 = vmatprep.subr.mxu0 %v89
    %436 = vmatpush1.xpose.msra.mxu0 %v88
    %437 = vmatprep.subr.mxu0 %v93
    %438 = vmatpush1.xpose.msra.mxu0 %v92
    %439 = vmatprep.subr.mxu0 %v97
    %440 = vmatpush1.xpose.msra.mxu0 %v96
    %441 = vmatprep.subr.mxu0 %v101
    %442 = vmatpush1.xpose.msra.mxu0 %v100
    %443 = vmatprep.subr.mxu0 %v105
    %444 = vmatpush1.xpose.msra.mxu0 %v104
    %445 = vmatprep.subr.mxu0 %v109
    %446 = vmatpush1.xpose.msra.mxu0 %v108
    %447 = vmatprep.subr.mxu0 %v113
    %448 = vmatpush1.xpose.msra.mxu0 %v112
    %449 = vmatprep.subr.mxu0 %v117
    %450 = vmatpush1.xpose.msra.mxu0 %v116
    %451 = vmatprep.subr.mxu0 %v121
    %452 = vmatpush1.xpose.msra.mxu0 %v120
    %453 = vmatprep.subr.mxu0 %v125
    %454 = vmatpush1.xpose.msra.mxu0 %v124
    %455 = vmatprep.subr.mxu0 %v129
    %456 = vmatpush1.xpose.msra.mxu0 %v128
    %457 = vmatprep.subr.mxu0 %v133
    %458 = vmatpush1.xpose.msra.mxu0 %v132
    %459 = vmatprep.subr.mxu0 %v137
    %460 = vmatpush1.xpose.msra.mxu0 %v136
    %461 = vmatprep.subr.mxu0 %v141
    %462 = vmatpush1.xpose.msra.mxu0 %v140
    %463 = vmatprep.subr.mxu0 %v145
    %464 = vmatpush1.xpose.msra.mxu0 %v144
    %465 = vmatprep.subr.mxu0 %v149
    %466 = vmatpush1.xpose.msra.mxu0 %v148
    %467 = vmatprep.subr.mxu0 %v153
    %468 = vmatpush1.xpose.msra.mxu0 %v152
    %469 = vmatprep.subr.mxu0 %v157
    %470 = vmatpush1.xpose.msra.mxu0 %v156
    %471 = vmatprep.subr.mxu0 %v161
    %472 = vmatpush1.xpose.msra.mxu0 %v160
    %473 = vmatprep.subr.mxu0 %v165
    %474 = vmatpush1.xpose.msra.mxu0 %v164
    %475 = vmatprep.subr.mxu0 %v169
    %476 = vmatpush1.xpose.msra.mxu0 %v168
    %477 = vmatprep.mubr.f32.mxu0 %v337
    %478 = vmatmul.mubr.f32.gmra.mrb[0].mxu0 %v335
    %v479 = vpop.f32.mrb[0].mxu0
    %v480 = vadd.f32 %v409, %v479
    %v481 = vpop.f32.mrb[0].mxu0
    %v482 = vadd.f32 %v411, %v481
    %483 = vdwg.mxu0
    %484 = vmatprep.subr.mxu0 %v171
    %485 = vmatpush1.xpose.msra.mxu0 %v170
    %486 = vmatprep.subr.mxu0 %v175
    %487 = vmatpush1.xpose.msra.mxu0 %v174
    %488 = vmatprep.subr.mxu0 %v179
    %489 = vmatpush1.xpose.msra.mxu0 %v178
    %490 = vmatprep.subr.mxu0 %v183
    %491 = vmatpush1.xpose.msra.mxu0 %v182
    %492 = vmatprep.subr.mxu0 %v187
    %493 = vmatpush1.xpose.msra.mxu0 %v186
    %494 = vmatprep.subr.mxu0 %v191
    %495 = vmatpush1.xpose.msra.mxu0 %v190
    %496 = vmatprep.subr.mxu0 %v195
    %497 = vmatpush1.xpose.msra.mxu0 %v194
    %498 = vmatprep.subr.mxu0 %v199
    %499 = vmatpush1.xpose.msra.mxu0 %v198
    %500 = vmatprep.subr.mxu0 %v203
    %501 = vmatpush1.xpose.msra.mxu0 %v202
    %502 = vmatprep.subr.mxu0 %v207
    %503 = vmatpush1.xpose.msra.mxu0 %v206
    %504 = vmatprep.subr.mxu0 %v211
    %505 = vmatpush1.xpose.msra.mxu0 %v210
    %506 = vmatprep.subr.mxu0 %v215
    %507 = vmatpush1.xpose.msra.mxu0 %v214
    %508 = vmatprep.subr.mxu0 %v219
    %509 = vmatpush1.xpose.msra.mxu0 %v218
    %510 = vmatprep.subr.mxu0 %v223
    %511 = vmatpush1.xpose.msra.mxu0 %v222
    %512 = vmatprep.subr.mxu0 %v227
    %513 = vmatpush1.xpose.msra.mxu0 %v226
    %514 = vmatprep.subr.mxu0 %v231
    %515 = vmatpush1.xpose.msra.mxu0 %v230
    %516 = vmatprep.subr.mxu0 %v235
    %517 = vmatpush1.xpose.msra.mxu0 %v234
    %518 = vmatprep.subr.mxu0 %v239
    %519 = vmatpush1.xpose.msra.mxu0 %v238
    %520 = vmatprep.subr.mxu0 %v243
    %521 = vmatpush1.xpose.msra.mxu0 %v242
    %522 = vmatprep.subr.mxu0 %v247
    %523 = vmatpush1.xpose.msra.mxu0 %v246
    %524 = vmatprep.subr.mxu0 %v251
    %525 = vmatpush1.xpose.msra.mxu0 %v250
    %526 = vmatprep.subr.mxu0 %v255
    %527 = vmatpush1.xpose.msra.mxu0 %v254
    %528 = vmatprep.subr.mxu0 %v259
    %529 = vmatpush1.xpose.msra.mxu0 %v258
    %530 = vmatprep.subr.mxu0 %v263
    %531 = vmatpush1.xpose.msra.mxu0 %v262
    %532 = vmatprep.subr.mxu0 %v267
    %533 = vmatpush1.xpose.msra.mxu0 %v266
    %534 = vmatprep.subr.mxu0 %v271
    %535 = vmatpush1.xpose.msra.mxu0 %v270
    %536 = vmatprep.subr.mxu0 %v275
    %537 = vmatpush1.xpose.msra.mxu0 %v274
    %538 = vmatprep.subr.mxu0 %v279
    %539 = vmatpush1.xpose.msra.mxu0 %v278
    %540 = vmatprep.subr.mxu0 %v283
    %541 = vmatpush1.xpose.msra.mxu0 %v282
    %542 = vmatprep.subr.mxu0 %v287
    %543 = vmatpush1.xpose.msra.mxu0 %v286
    %544 = vmatprep.subr.mxu0 %v291
    %545 = vmatpush1.xpose.msra.mxu0 %v290
    %546 = vmatprep.subr.mxu0 %v295
    %547 = vmatpush1.xpose.msra.mxu0 %v294
    %548 = vmatprep.mubr.f32.mxu0 %v336
    %549 = vmatmul.mubr.f32.gmra.mrb[0].mxu0 %v328
    %v550 = vpop.f32.mrb[0].mxu0
    %v551 = vadd.f32 %v311, %v550
    %v552 = vpop.f32.mrb[0].mxu0
    %v553 = vadd.f32 %v315, %v552
    %554 = vdwg.mxu0
    %555 = vmatprep.subr.mxu0 %v173
    %556 = vmatpush1.xpose.msra.mxu0 %v172
    %557 = vmatprep.subr.mxu0 %v177
    %558 = vmatpush1.xpose.msra.mxu0 %v176
    %559 = vmatprep.subr.mxu0 %v181
    %560 = vmatpush1.xpose.msra.mxu0 %v180
    %561 = vmatprep.subr.mxu0 %v185
    %562 = vmatpush1.xpose.msra.mxu0 %v184
    %563 = vmatprep.subr.mxu0 %v189
    %564 = vmatpush1.xpose.msra.mxu0 %v188
    %565 = vmatprep.subr.mxu0 %v193
    %566 = vmatpush1.xpose.msra.mxu0 %v192
    %567 = vmatprep.subr.mxu0 %v197
    %568 = vmatpush1.xpose.msra.mxu0 %v196
    %569 = vmatprep.subr.mxu0 %v201
    %570 = vmatpush1.xpose.msra.mxu0 %v200
    %571 = vmatprep.subr.mxu0 %v205
    %572 = vmatpush1.xpose.msra.mxu0 %v204
    %573 = vmatprep.subr.mxu0 %v209
    %574 = vmatpush1.xpose.msra.mxu0 %v208
    %575 = vmatprep.subr.mxu0 %v213
    %576 = vmatpush1.xpose.msra.mxu0 %v212
    %577 = vmatprep.subr.mxu0 %v217
    %578 = vmatpush1.xpose.msra.mxu0 %v216
    %579 = vmatprep.subr.mxu0 %v221
    %580 = vmatpush1.xpose.msra.mxu0 %v220
    %581 = vmatprep.subr.mxu0 %v225
    %582 = vmatpush1.xpose.msra.mxu0 %v224
    %583 = vmatprep.subr.mxu0 %v229
    %584 = vmatpush1.xpose.msra.mxu0 %v228
    %585 = vmatprep.subr.mxu0 %v233
    %586 = vmatpush1.xpose.msra.mxu0 %v232
    %587 = vmatprep.subr.mxu0 %v237
    %588 = vmatpush1.xpose.msra.mxu0 %v236
    %589 = vmatprep.subr.mxu0 %v241
    %590 = vmatpush1.xpose.msra.mxu0 %v240
    %591 = vmatprep.subr.mxu0 %v245
    %592 = vmatpush1.xpose.msra.mxu0 %v244
    %593 = vmatprep.subr.mxu0 %v249
    %594 = vmatpush1.xpose.msra.mxu0 %v248
    %595 = vmatprep.subr.mxu0 %v253
    %596 = vmatpush1.xpose.msra.mxu0 %v252
    %597 = vmatprep.subr.mxu0 %v257
    %598 = vmatpush1.xpose.msra.mxu0 %v256
    %599 = vmatprep.subr.mxu0 %v261
    %600 = vmatpush1.xpose.msra.mxu0 %v260
    %601 = vmatprep.subr.mxu0 %v265
    %602 = vmatpush1.xpose.msra.mxu0 %v264
    %603 = vmatprep.subr.mxu0 %v269
    %604 = vmatpush1.xpose.msra.mxu0 %v268
    %605 = vmatprep.subr.mxu0 %v273
    %606 = vmatpush1.xpose.msra.mxu0 %v272
    %607 = vmatprep.subr.mxu0 %v277
    %608 = vmatpush1.xpose.msra.mxu0 %v276
    %609 = vmatprep.subr.mxu0 %v281
    %610 = vmatpush1.xpose.msra.mxu0 %v280
    %611 = vmatprep.subr.mxu0 %v285
    %612 = vmatpush1.xpose.msra.mxu0 %v284
    %613 = vmatprep.subr.mxu0 %v289
    %614 = vmatpush1.xpose.msra.mxu0 %v288
    %615 = vmatprep.subr.mxu0 %v293
    %616 = vmatpush1.xpose.msra.mxu0 %v292
    %617 = vmatprep.subr.mxu0 %v297
    %618 = vmatpush1.xpose.msra.mxu0 %v296
    %619 = vmatprep.mubr.f32.mxu0 %v337
    %620 = vmatmul.mubr.f32.gmra.mrb[0].mxu0 %v335
    %v621 = vpop.f32.mrb[0].mxu0
    %v622 = vadd.f32 %v551, %v621
    %v623 = vpop.f32.mrb[0].mxu0
    %v624 = vadd.f32 %v553, %v623
    %625 = vdwg.mxu0
    %v630 = vcombine.low %v480, %v482
    %v631 = vcombine.low %v622, %v624
    %v633 = vunpack.c.l.s4 1983009808
    %v634 = vunpack.c.0.s8 %v633
    %v635 = vlaneseq
    %v636 = vshrl.u32 %v635, 7
    %v637 = vsub.s32 %v634, %v636
    %v638 = vrot.slane %v630, %v637
    %v640 = vunpack.c.l.s4 1983009808
    %v641 = vunpack.c.0.s8 %v640
    %v642 = vlaneseq
    %v643 = vshrl.u32 %v642, 7
    %v644 = vsub.s32 %v641, %v643
    %v645 = vrot.slane %v631, %v644
    %v646 = vcombine.low %v638, %v645
    %648 = vst [vmem:[#allocation7] sm:$0xff] %v646
    // Predicated region
    $region22: #{tpu_custom_call.1} parent=1 // pred_check
      _
    $region23: #{tpu_custom_call.1} parent=1 // pred_check_branch
      %650 = sbr.rel (0) target = $region25
    $region24: #{tpu_custom_call.1} parent=1 // pred_region
      %s652 = ssub.s32 128, 128
      %653 = vsyncadd [#allocation4], %s652
      %s655 = sshll.u32 [#allocation7], 4
      %s656 = int_to_ptr.vmem [resolvable:$true] %s655
      %658 = dma.vmem_to_hbm [thread:$0]  %s656, 128, %s3, [#allocation4]
    $region25: #{tpu_custom_call.1} parent=1 // pred_fallthru
      _
    // Predicated region
    $region26: #{tpu_custom_call.1} parent=1 // pred_check
      _
    $region27: #{tpu_custom_call.1} parent=1 // pred_check_branch
      %660 = sbr.rel (0) target = $region29
    $region28: #{tpu_custom_call.1} parent=1 // pred_region
      %661 = dma.done [#allocation4], 128
    $region29: #{tpu_custom_call.1} parent=1 // pred_fallthru
      _
    %662 = vsyncpa [#allocation3], 1
    %663 = vsyncpa [#allocation6], 1
    %664 = vsyncpa [#allocation4], 1

</llo_original>
